<compile_context>
chip_gen: v7x
topology: tpu7x:2x2x1
jax: 0.10.0
libtpu: 0.0.40
codegen_flags: <defaults>
</compile_context>

<pallas_src>
import jax
import jax.numpy as jnp
from jax.experimental import pallas as pl
from jax.experimental.pallas import tpu as pltpu


def _round_up(x, m):
    return ((x + m - 1) // m) * m


def upsample_conv_kernel(patches_ref, w_ref, b_ref, alpha_ref, o_ref):
    """One pixel-tile of: conv3x3 (single folded-K MXU matmul) + bias + PReLU.

    patches_ref: (TILE_NHW, Kp)     bf16 im2col rows, K = 9*Cin padded to Kp
    w_ref:       (Kp, Cout_p)       bf16 folded conv weight
    b_ref:       (1, Cout_p)        f32 conv bias (zero-padded)
    alpha_ref:   (1, Cout_p)        f32 PReLU slope per conv-output channel
    o_ref:       (TILE_NHW, Cout_p) f32
    """
    acc = jnp.dot(patches_ref[...], w_ref[...],
                  preferred_element_type=jnp.float32)
    acc = acc + b_ref[...]
    alpha = alpha_ref[...]
    # PReLU: x if x >= 0 else alpha * x   (alpha broadcast over channels)
    o_ref[...] = jnp.where(acc >= 0.0, acc, alpha * acc)


def upsample_block(x_nchw, weight, bias, prelu_alpha, scale_factor=2,
                   tile_nhw_max=2048):
    """Forward of UpsampleBlock: conv3x3 -> PixelShuffle(r) -> PReLU(in_ch).

    x_nchw:      (N, Cin, H, W)
    weight:      (Cout, Cin, 3, 3) with Cout = Cin * r**2  (PyTorch OIHW)
    bias:        (Cout,)
    prelu_alpha: (Cin,)
    returns      (N, Cin, H*r, W*r), float32, NCHW

    tile_nhw_max: rows per grid step.  2048 keeps the double-buffered working
    set well inside v7x's 64 MiB VMEM even at Cin=64; v6e/v5e (128 MiB) can
    raise it (e.g. 8192) to further amortize per-step overhead.
    """
    r = scale_factor
    N, Cin, H, W = x_nchw.shape
    Cout = Cin * r * r
    assert weight.shape == (Cout, Cin, 3, 3)

    K = 9 * Cin
    Kp = _round_up(K, 128)            # lane-dense contraction dim
    Cout_p = _round_up(Cout, 128)     # lane-dense output stores
    nhw = N * H * W
    tile_nhw = min(tile_nhw_max, _round_up(nhw, 16))   # bf16 sublane multiple
    nhw_p = _round_up(nhw, tile_nhw)

    # --- glue: NCHW -> NHWC (bf16), zero-pad halo, fold the 9 taps into K.
    # TODO(synk): eliminate this HBM-materialized im2col (9x input bytes) by
    # tiling the grid over (N, H-rows), DMAing an (H_tile+2) halo block per
    # step and building the 9 shifted views inside the kernel.
    x_nhwc = jnp.transpose(x_nchw, (0, 2, 3, 1)).astype(jnp.bfloat16)
    x_pad = jnp.pad(x_nhwc, ((0, 0), (1, 1), (1, 1), (0, 0)))
    taps = [x_pad[:, dy:dy + H, dx:dx + W, :]
            for dy in range(3) for dx in range(3)]
    patches = jnp.concatenate(taps, axis=-1).reshape(nhw, K)
    patches = jnp.pad(patches, ((0, nhw_p - nhw), (0, Kp - K)))

    # weight OIHW -> (ky, kx, Cin, Cout) -> (K, Cout); K index = (dy*3+dx)*Cin+c
    w_folded = jnp.transpose(weight, (2, 3, 1, 0)).reshape(K, Cout)
    w_folded = jnp.pad(w_folded.astype(jnp.bfloat16),
                       ((0, Kp - K), (0, Cout_p - Cout)))
    b2d = jnp.pad(bias.astype(jnp.float32).reshape(1, Cout),
                  ((0, 0), (0, Cout_p - Cout)))
    # PReLU slope for conv-output channel c*r^2 + i*r + j is alpha[c].
    alpha2d = jnp.repeat(prelu_alpha.astype(jnp.float32), r * r).reshape(1, Cout)
    alpha2d = jnp.pad(alpha2d, ((0, 0), (0, Cout_p - Cout)))

    grid = (nhw_p // tile_nhw,)
    bytes_accessed = (patches.size * 2 + w_folded.size * 2
                      + b2d.size * 4 + alpha2d.size * 4 + nhw_p * Cout_p * 4)

    out_flat = pl.pallas_call(
        upsample_conv_kernel,
        out_shape=jax.ShapeDtypeStruct((nhw_p, Cout_p), jnp.float32),
        grid=grid,
        in_specs=[
            pl.BlockSpec((tile_nhw, Kp), lambda i: (i, 0)),
            pl.BlockSpec((Kp, Cout_p), lambda i: (0, 0)),
            pl.BlockSpec((1, Cout_p), lambda i: (0, 0)),
            pl.BlockSpec((1, Cout_p), lambda i: (0, 0)),
        ],
        out_specs=pl.BlockSpec((tile_nhw, Cout_p), lambda i: (i, 0)),
        compiler_params=pltpu.CompilerParams(
            dimension_semantics=("parallel",),
            vmem_limit_bytes=64 * 1024 * 1024,
        ),
        cost_estimate=pl.CostEstimate(
            flops=2 * nhw_p * Kp * Cout_p,
            transcendentals=0,
            bytes_accessed=bytes_accessed,
        ),
    )(patches, w_folded, b2d, alpha2d)

    out_flat = out_flat[:nhw, :Cout]   # strip row / channel padding

    # --- glue: pixel shuffle (pure permutation) and back to NCHW.
    # TODO(synk): for a mem-bound block, keeping NHWC end-to-end and fusing the
    # shuffle into the consumer would save two full HBM passes per call.
    y = out_flat.reshape(N, H, W, Cin, r, r)          # [n, h, w, c, i, j]
    y = jnp.transpose(y, (0, 3, 1, 4, 2, 5))          # [n, c, h, i, w, j]
    return y.reshape(N, Cin, H * r, W * r)


def reference(x_nchw, weight, bias, alpha, r=2):
    """Pure-JAX reference matching PyTorch semantics.  Inputs are rounded to
    bf16 (the kernel feeds the MXU in bf16); accumulation is f32, so the two
    should agree to f32 rounding."""
    xq = x_nchw.astype(jnp.bfloat16).astype(jnp.float32)
    wq = weight.astype(jnp.bfloat16).astype(jnp.float32)
    conv = jax.lax.conv_general_dilated(
        xq, wq,
        window_strides=(1, 1),
        padding=((1, 1), (1, 1)),
        dimension_numbers=("NCHW", "OIHW", "NCHW"),
        precision=jax.lax.Precision.HIGHEST,
    )
    conv = conv + bias.reshape(1, -1, 1, 1).astype(jnp.float32)
    N, Cout, H, W = conv.shape
    Cin = Cout // (r * r)
    y = conv.reshape(N, Cin, r, r, H, W)
    y = jnp.transpose(y, (0, 1, 4, 2, 5, 3)).reshape(N, Cin, H * r, W * r)
    a = alpha.reshape(1, Cin, 1, 1).astype(jnp.float32)
    return jnp.where(y >= 0.0, y, a * y)


if __name__ == "__main__":
    key = jax.random.PRNGKey(0)
    k1, k2, k3 = jax.random.split(key, 3)

    N, Cin, H, W = 2, 4, 16, 16
    r = 2
    Cout = Cin * r * r

    x = jax.random.normal(k1, (N, Cin, H, W), dtype=jnp.float32)
    weight = 0.1 * jax.random.normal(k2, (Cout, Cin, 3, 3), dtype=jnp.float32)
    bias = 0.1 * jax.random.normal(k3, (Cout,), dtype=jnp.float32)
    alpha = jnp.full((Cin,), 0.25, dtype=jnp.float32)  # PyTorch PReLU default

    out = upsample_block(x, weight, bias, alpha, scale_factor=r)
    out = jax.block_until_ready(out)

    ref = reference(x, weight, bias, alpha, r)
    assert out.shape == (N, Cin, H * r, W * r), out.shape
    if not jnp.allclose(out, ref, atol=1e-4, rtol=1e-4):
        raise AssertionError("Pallas output mismatch vs reference")
    print("KERNEL_OK")
</pallas_src>

<mosaic_0001>
module attributes {stable_mosaic.version = 11 : i64} {
  func.func @upsample_conv_kernel(%arg0: i32, %arg1: memref<512x128xbf16, #tpu.memory_space<vmem>>, %arg2: memref<128x128xbf16, #tpu.memory_space<vmem>>, %arg3: memref<1x128xf32, #tpu.memory_space<vmem>>, %arg4: memref<1x128xf32, #tpu.memory_space<vmem>>, %arg5: memref<512x128xf32, #tpu.memory_space<vmem>>) attributes {dimension_semantics = [#tpu.dimension_semantics<parallel>], iteration_bounds = array<i64: 1>, scalar_prefetch = 0 : i64, scratch_operands = 0 : i64, tpu.core_type = #tpu.core_type<tc>, window_params = [{transform_indices = @transform_0, window_bounds = array<i64: 512, 128>}, {pipeline_mode = #tpu.pipeline_mode<synchronous>, transform_indices = @transform_1, window_bounds = array<i64: 128, 128>}, {pipeline_mode = #tpu.pipeline_mode<synchronous>, transform_indices = @transform_2, window_bounds = array<i64: 1, 128>}, {pipeline_mode = #tpu.pipeline_mode<synchronous>, transform_indices = @transform_3, window_bounds = array<i64: 1, 128>}, {transform_indices = @transform_4, window_bounds = array<i64: 512, 128>}]} {
    %c0 = arith.constant 0 : index
    %c0_0 = arith.constant 0 : index
    %0 = vector.load %arg1[%c0, %c0_0] : memref<512x128xbf16, #tpu.memory_space<vmem>>, vector<512x128xbf16>
    %c0_1 = arith.constant 0 : index
    %c0_2 = arith.constant 0 : index
    %1 = vector.load %arg2[%c0_1, %c0_2] : memref<128x128xbf16, #tpu.memory_space<vmem>>, vector<128x128xbf16>
    %cst = arith.constant dense<0.000000e+00> : vector<512x128xf32>
    %2 = tpu.matmul %0, %1, %cst {dimension_numbers = #tpu.dot_dimension_numbers<[1], [0], [0], [1], [0, 0, 1, 1], [], []>} : vector<512x128xbf16>, vector<128x128xbf16>, vector<512x128xf32> -> vector<512x128xf32>
    %c0_3 = arith.constant 0 : index
    %c0_4 = arith.constant 0 : index
    %3 = vector.load %arg3[%c0_3, %c0_4] : memref<1x128xf32, #tpu.memory_space<vmem>>, vector<1x128xf32>
    %4 = vector.broadcast %3 : vector<1x128xf32> to vector<512x128xf32>
    %5 = arith.addf %2, %4 : vector<512x128xf32>
    %c0_5 = arith.constant 0 : index
    %c0_6 = arith.constant 0 : index
    %6 = vector.load %arg4[%c0_5, %c0_6] : memref<1x128xf32, #tpu.memory_space<vmem>>, vector<1x128xf32>
    %cst_7 = arith.constant 0.000000e+00 : f32
    %7 = vector.broadcast %cst_7 : f32 to vector<512x128xf32>
    %8 = arith.cmpf oge, %5, %7 : vector<512x128xf32>
    %9 = vector.broadcast %6 : vector<1x128xf32> to vector<512x128xf32>
    %10 = arith.mulf %9, %5 : vector<512x128xf32>
    %11 = arith.select %8, %5, %10 : vector<512x128xi1>, vector<512x128xf32>
    %c0_8 = arith.constant 0 : index
    %c0_9 = arith.constant 0 : index
    %12 = vector.load %arg5[%c0_8, %c0_9] : memref<512x128xf32, #tpu.memory_space<vmem>>, vector<512x128xf32>
    tpu.vector_store %arg5[%c0_8, %c0_9], %11 {strides = array<i32>} : memref<512x128xf32, #tpu.memory_space<vmem>>, vector<512x128xf32>,
    return
  }
  func.func @transform_0(%arg0: i32) -> (i32, i32) {
    %c0_i32 = arith.constant 0 : i32
    %c0_i32_0 = arith.constant 0 : i32
    return %arg0, %c0_i32 : i32, i32
  }
  func.func @transform_1(%arg0: i32) -> (i32, i32) {
    %c0_i32 = arith.constant 0 : i32
    %c0_i32_0 = arith.constant 0 : i32
    %c0_i32_1 = arith.constant 0 : i32
    return %c0_i32, %c0_i32_0 : i32, i32
  }
  func.func @transform_2(%arg0: i32) -> (i32, i32) {
    %c0_i32 = arith.constant 0 : i32
    %c0_i32_0 = arith.constant 0 : i32
    %c0_i32_1 = arith.constant 0 : i32
    return %c0_i32, %c0_i32_0 : i32, i32
  }
  func.func @transform_3(%arg0: i32) -> (i32, i32) {
    %c0_i32 = arith.constant 0 : i32
    %c0_i32_0 = arith.constant 0 : i32
    %c0_i32_1 = arith.constant 0 : i32
    return %c0_i32, %c0_i32_0 : i32, i32
  }
  func.func @transform_4(%arg0: i32) -> (i32, i32) {
    %c0_i32 = arith.constant 0 : i32
    %c0_i32_0 = arith.constant 0 : i32
    return %arg0, %c0_i32 : i32, i32
  }
}

</mosaic_0001>

<llo_original>
// kernel: tpu_custom_call.1
$region0: #{tpu_custom_call.1}
  #allocation0 [shape = 'u32[]', space=smem, size = 0x4, offset = 0x4, fixed_abs, tag = 'smem constant byte address 0x4 - core index']
  #allocation1 [shape = 'u32[144,128]{1,0:T(1,128)}', space=vmem, size = 0x12000, scoped, tag = 'internal scratch']
  %s0 = inlined_call_operand.hbm [shape: bf16[512,128], index: 0, kind: input, shape index: {}]
  %s1 = inlined_call_operand.hbm [shape: bf16[128,128], index: 1, kind: input, shape index: {}]
  %s2 = inlined_call_operand.hbm [shape: f32[1,128], index: 2, kind: input, shape index: {}]
  %s3 = inlined_call_operand.hbm [shape: f32[1,128], index: 3, kind: input, shape index: {}]
  %s4 = inlined_call_operand.hbm [shape: f32[512,128], index: 4, kind: output, shape index: {}]
  %s5 = sld [smem:[#allocation0]]
  $region42: #{tpu_custom_call.1} parent=0
    _
  %s7 = ssub.s32 1, %s5
  %s8 = scalar_select 0, %s7, %s5
  $region1: #{tpu_custom_call.1} parent=0
    #allocation2 [shape = 'u8[131072]{0}', space=vmem, size = 0x20000, scoped, tag = 'input window, operand 0, single buffered']
    #allocation3 [shape = 's32[1]{0}', space=sflag, size = 0x4, scoped, tag = 'scoped memory for tpu_custom_call.1']
    #allocation4 [shape = 's32[1]{0}', space=sflag, size = 0x4, scoped, tag = 'scoped memory for tpu_custom_call.1']
    #allocation5 [shape = 'u8[32768]{0}', space=vmem, size = 0x8000, scoped, tag = 'input window, operand 1, single buffered']
    #allocation6 [shape = 's32[1]{0}', space=sflag, size = 0x4, scoped, tag = 'scoped memory for tpu_custom_call.1']
    #allocation7 [shape = 'u8[512]{0}', space=vmem, size = 0x400, scoped, tag = 'input window, operand 2, single buffered']
    #allocation8 [shape = 'u8[512]{0}', space=vmem, size = 0x400, scoped, tag = 'input window, operand 3, single buffered']
    #allocation9 [shape = 's32[1]{0}', space=sflag, size = 0x4, scoped, tag = 'scoped memory for tpu_custom_call.1']
    #allocation10 [shape = 'u8[262144]{0}', space=vmem, size = 0x40000, scoped, tag = 'output window, operand 0, single buffered']
    %9 = vsyncpa [#allocation3], 0
    %10 = vsyncpa [#allocation6], 0
    %11 = vsyncpa [#allocation9], 0
    %12 = vsyncpa [#allocation4], 0
    // Predicated region
    $region2: #{tpu_custom_call.1} parent=1 // pred_check
      _
    $region3: #{tpu_custom_call.1} parent=1 // pred_check_branch
      %14 = sbr.rel (0) target = $region5
    $region4: #{tpu_custom_call.1} parent=1 // pred_region
      %s16 = ssub.s32 4096, 4096
      %17 = vsyncadd [#allocation3], %s16
      %s18 = sshll.u32 [#allocation2], 4
      %s19 = int_to_ptr.vmem [resolvable:$true] %s18
      %24 = dma.hbm_to_vmem [thread:$0]  %s0, 4096, %s19, [#allocation3], 64, 64, 4
    $region5: #{tpu_custom_call.1} parent=1 // pred_fallthru
      _
    // Predicated region
    $region6: #{tpu_custom_call.1} parent=1 // pred_check
      _
    $region7: #{tpu_custom_call.1} parent=1 // pred_check_branch
      %26 = sbr.rel (0) target = $region9
    $region8: #{tpu_custom_call.1} parent=1 // pred_region
      %s28 = ssub.s32 1024, 1024
      %29 = vsyncadd [#allocation6], %s28
      %s30 = sshll.u32 [#allocation5], 4
      %s31 = int_to_ptr.vmem [resolvable:$true] %s30
      %36 = dma.hbm_to_vmem [thread:$0]  %s1, 1024, %s31, [#allocation6], 64, 64, 4
    $region9: #{tpu_custom_call.1} parent=1 // pred_fallthru
      _
    // Predicated region
    $region10: #{tpu_custom_call.1} parent=1 // pred_check
      _
    $region11: #{tpu_custom_call.1} parent=1 // pred_check_branch
      %38 = sbr.rel (0) target = $region13
    $region12: #{tpu_custom_call.1} parent=1 // pred_region
      %s40 = ssub.s32 16, 16
      %41 = vsyncadd [#allocation6], %s40
      %s43 = sshll.u32 [#allocation7], 4
      %s44 = int_to_ptr.vmem [resolvable:$true] %s43
      %46 = dma.hbm_to_vmem [thread:$0]  %s2, 16, %s44, [#allocation6]
    $region13: #{tpu_custom_call.1} parent=1 // pred_fallthru
      _
    // Predicated region
    $region14: #{tpu_custom_call.1} parent=1 // pred_check
      _
    $region15: #{tpu_custom_call.1} parent=1 // pred_check_branch
      %48 = sbr.rel (0) target = $region17
    $region16: #{tpu_custom_call.1} parent=1 // pred_region
      %s50 = ssub.s32 16, 16
      %51 = vsyncadd [#allocation9], %s50
      %s53 = sshll.u32 [#allocation8], 4
      %s54 = int_to_ptr.vmem [resolvable:$true] %s53
      %56 = dma.hbm_to_vmem [thread:$0]  %s3, 16, %s54, [#allocation9]
    $region17: #{tpu_custom_call.1} parent=1 // pred_fallthru
      _
    // Predicated region
    $region18: #{tpu_custom_call.1} parent=1 // pred_check
      _
    $region19: #{tpu_custom_call.1} parent=1 // pred_check_branch
      %58 = sbr.rel (0) target = $region21
    $region20: #{tpu_custom_call.1} parent=1 // pred_region
      %59 = dma.done [#allocation3], 4096
    $region21: #{tpu_custom_call.1} parent=1 // pred_fallthru
      _
    // Predicated region
    $region22: #{tpu_custom_call.1} parent=1 // pred_check
      _
    $region23: #{tpu_custom_call.1} parent=1 // pred_check_branch
      %61 = sbr.rel (0) target = $region25
    $region24: #{tpu_custom_call.1} parent=1 // pred_region
      %62 = dma.done [#allocation6], 1024
    $region25: #{tpu_custom_call.1} parent=1 // pred_fallthru
      _
    // Predicated region
    $region26: #{tpu_custom_call.1} parent=1 // pred_check
      _
    $region27: #{tpu_custom_call.1} parent=1 // pred_check_branch
      %64 = sbr.rel (0) target = $region29
    $region28: #{tpu_custom_call.1} parent=1 // pred_region
      %65 = dma.done [#allocation6], 16
    $region29: #{tpu_custom_call.1} parent=1 // pred_fallthru
      _
    // Predicated region
    $region30: #{tpu_custom_call.1} parent=1 // pred_check
      _
    $region31: #{tpu_custom_call.1} parent=1 // pred_check_branch
      %67 = sbr.rel (0) target = $region33
    $region32: #{tpu_custom_call.1} parent=1 // pred_region
      %68 = dma.done [#allocation9], 16
    $region33: #{tpu_custom_call.1} parent=1 // pred_fallthru
      _
    %v70 = vld [vmem:[#allocation2] sm:$0xf]
    %v71 = vld [vmem:[#allocation2 + $0x4] sm:$0xf]
    %v72 = vld [vmem:[#allocation2 + $0x8] sm:$0xf]
    %v73 = vld [vmem:[#allocation2 + $0xc] sm:$0xf]
    %v74 = vld [vmem:[#allocation2 + $0x10] sm:$0xf]
    %v75 = vld [vmem:[#allocation2 + $0x14] sm:$0xf]
    %v76 = vld [vmem:[#allocation2 + $0x18] sm:$0xf]
    %v77 = vld [vmem:[#allocation2 + $0x1c] sm:$0xf]
    %v78 = vld [vmem:[#allocation2 + $0x20] sm:$0xf]
    %v79 = vld [vmem:[#allocation2 + $0x24] sm:$0xf]
    %v80 = vld [vmem:[#allocation2 + $0x28] sm:$0xf]
    %v81 = vld [vmem:[#allocation2 + $0x2c] sm:$0xf]
    %v82 = vld [vmem:[#allocation2 + $0x30] sm:$0xf]
    %v83 = vld [vmem:[#allocation2 + $0x34] sm:$0xf]
    %v84 = vld [vmem:[#allocation2 + $0x38] sm:$0xf]
    %v85 = vld [vmem:[#allocation2 + $0x3c] sm:$0xf]
    %v86 = vld [vmem:[#allocation2 + $0x40] sm:$0xf]
    %v87 = vld [vmem:[#allocation2 + $0x44] sm:$0xf]
    %v88 = vld [vmem:[#allocation2 + $0x48] sm:$0xf]
    %v89 = vld [vmem:[#allocation2 + $0x4c] sm:$0xf]
    %v90 = vld [vmem:[#allocation2 + $0x50] sm:$0xf]
    %v91 = vld [vmem:[#allocation2 + $0x54] sm:$0xf]
    %v92 = vld [vmem:[#allocation2 + $0x58] sm:$0xf]
    %v93 = vld [vmem:[#allocation2 + $0x5c] sm:$0xf]
    %v94 = vld [vmem:[#allocation2 + $0x60] sm:$0xf]
    %v95 = vld [vmem:[#allocation2 + $0x64] sm:$0xf]
    %v96 = vld [vmem:[#allocation2 + $0x68] sm:$0xf]
    %v97 = vld [vmem:[#allocation2 + $0x6c] sm:$0xf]
    %v98 = vld [vmem:[#allocation2 + $0x70] sm:$0xf]
    %v99 = vld [vmem:[#allocation2 + $0x74] sm:$0xf]
    %v100 = vld [vmem:[#allocation2 + $0x78] sm:$0xf]
    %v101 = vld [vmem:[#allocation2 + $0x7c] sm:$0xf]
    %v102 = vld [vmem:[#allocation2 + $0x80] sm:$0xf]
    %v103 = vld [vmem:[#allocation2 + $0x84] sm:$0xf]
    %v104 = vld [vmem:[#allocation2 + $0x88] sm:$0xf]
    %v105 = vld [vmem:[#allocation2 + $0x8c] sm:$0xf]
    %v106 = vld [vmem:[#allocation2 + $0x90] sm:$0xf]
    %v107 = vld [vmem:[#allocation2 + $0x94] sm:$0xf]
    %v108 = vld [vmem:[#allocation2 + $0x98] sm:$0xf]
    %v109 = vld [vmem:[#allocation2 + $0x9c] sm:$0xf]
    %v110 = vld [vmem:[#allocation2 + $0xa0] sm:$0xf]
    %v111 = vld [vmem:[#allocation2 + $0xa4] sm:$0xf]
    %v112 = vld [vmem:[#allocation2 + $0xa8] sm:$0xf]
    %v113 = vld [vmem:[#allocation2 + $0xac] sm:$0xf]
    %v114 = vld [vmem:[#allocation2 + $0xb0] sm:$0xf]
    %v115 = vld [vmem:[#allocation2 + $0xb4] sm:$0xf]
    %v116 = vld [vmem:[#allocation2 + $0xb8] sm:$0xf]
    %v117 = vld [vmem:[#allocation2 + $0xbc] sm:$0xf]
    %v118 = vld [vmem:[#allocation2 + $0xc0] sm:$0xf]
    %v119 = vld [vmem:[#allocation2 + $0xc4] sm:$0xf]
    %v120 = vld [vmem:[#allocation2 + $0xc8] sm:$0xf]
    %v121 = vld [vmem:[#allocation2 + $0xcc] sm:$0xf]
    %v122 = vld [vmem:[#allocation2 + $0xd0] sm:$0xf]
    %v123 = vld [vmem:[#allocation2 + $0xd4] sm:$0xf]
    %v124 = vld [vmem:[#allocation2 + $0xd8] sm:$0xf]
    %v125 = vld [vmem:[#allocation2 + $0xdc] sm:$0xf]
    %v126 = vld [vmem:[#allocation2 + $0xe0] sm:$0xf]
    %v127 = vld [vmem:[#allocation2 + $0xe4] sm:$0xf]
    %v128 = vld [vmem:[#allocation2 + $0xe8] sm:$0xf]
    %v129 = vld [vmem:[#allocation2 + $0xec] sm:$0xf]
    %v130 = vld [vmem:[#allocation2 + $0xf0] sm:$0xf]
    %v131 = vld [vmem:[#allocation2 + $0xf4] sm:$0xf]
    %v132 = vld [vmem:[#allocation2 + $0xf8] sm:$0xf]
    %v133 = vld [vmem:[#allocation2 + $0xfc] sm:$0xf]
    %v134 = vld [vmem:[#allocation5] sm:$0xf]
    %v135 = vld [vmem:[#allocation5 + $0x4] sm:$0xf]
    %v136 = vld [vmem:[#allocation5 + $0x8] sm:$0xf]
    %v137 = vld [vmem:[#allocation5 + $0xc] sm:$0xf]
    %v138 = vld [vmem:[#allocation5 + $0x10] sm:$0xf]
    %v139 = vld [vmem:[#allocation5 + $0x14] sm:$0xf]
    %v140 = vld [vmem:[#allocation5 + $0x18] sm:$0xf]
    %v141 = vld [vmem:[#allocation5 + $0x1c] sm:$0xf]
    %v142 = vld [vmem:[#allocation5 + $0x20] sm:$0xf]
    %v143 = vld [vmem:[#allocation5 + $0x24] sm:$0xf]
    %v144 = vld [vmem:[#allocation5 + $0x28] sm:$0xf]
    %v145 = vld [vmem:[#allocation5 + $0x2c] sm:$0xf]
    %v146 = vld [vmem:[#allocation5 + $0x30] sm:$0xf]
    %v147 = vld [vmem:[#allocation5 + $0x34] sm:$0xf]
    %v148 = vld [vmem:[#allocation5 + $0x38] sm:$0xf]
    %v149 = vld [vmem:[#allocation5 + $0x3c] sm:$0xf]
    %v150 = vld [vmem:[#allocation7] sm:$0x1]
    %v152 = vlaneseq
    %v153 = vshrl.u32 %v152, 7
    %v154 = vsub.s32 0, %v153
    %v155 = vrot.slane %v150, %v154
    %v221 = vunpack.c.l.b16 %v70
    %v222 = vunpack.c.l.b16 %v71
    %v223 = vunpack.c.l.b16 %v72
    %v224 = vunpack.c.l.b16 %v73
    %v225 = vunpack.c.l.b16 %v74
    %v226 = vunpack.c.l.b16 %v75
    %v227 = vunpack.c.l.b16 %v76
    %v228 = vunpack.c.l.b16 %v77
    %v229 = vunpack.c.l.b16 %v78
    %v230 = vunpack.c.l.b16 %v79
    %v231 = vunpack.c.l.b16 %v80
    %v232 = vunpack.c.l.b16 %v81
    %v233 = vunpack.c.l.b16 %v82
    %v234 = vunpack.c.l.b16 %v83
    %v235 = vunpack.c.l.b16 %v84
    %v236 = vunpack.c.l.b16 %v85
    %v237 = vunpack.c.l.b16 %v86
    %v238 = vunpack.c.l.b16 %v87
    %v239 = vunpack.c.l.b16 %v88
    %v240 = vunpack.c.l.b16 %v89
    %v241 = vunpack.c.l.b16 %v90
    %v242 = vunpack.c.l.b16 %v91
    %v243 = vunpack.c.l.b16 %v92
    %v244 = vunpack.c.l.b16 %v93
    %v245 = vunpack.c.l.b16 %v94
    %v246 = vunpack.c.l.b16 %v95
    %v247 = vunpack.c.l.b16 %v96
    %v248 = vunpack.c.l.b16 %v97
    %v249 = vunpack.c.l.b16 %v98
    %v250 = vunpack.c.l.b16 %v99
    %v251 = vunpack.c.l.b16 %v100
    %v252 = vunpack.c.l.b16 %v101
    %v253 = vunpack.c.l.b16 %v102
    %v254 = vunpack.c.l.b16 %v103
    %v255 = vunpack.c.l.b16 %v104
    %v256 = vunpack.c.l.b16 %v105
    %v257 = vunpack.c.l.b16 %v106
    %v258 = vunpack.c.l.b16 %v107
    %v259 = vunpack.c.l.b16 %v108
    %v260 = vunpack.c.l.b16 %v109
    %v261 = vunpack.c.l.b16 %v110
    %v262 = vunpack.c.l.b16 %v111
    %v263 = vunpack.c.l.b16 %v112
    %v264 = vunpack.c.l.b16 %v113
    %v265 = vunpack.c.l.b16 %v114
    %v266 = vunpack.c.l.b16 %v115
    %v267 = vunpack.c.l.b16 %v116
    %v268 = vunpack.c.l.b16 %v117
    %v269 = vunpack.c.l.b16 %v118
    %v270 = vunpack.c.l.b16 %v119
    %v271 = vunpack.c.l.b16 %v120
    %v272 = vunpack.c.l.b16 %v121
    %v273 = vunpack.c.l.b16 %v122
    %v274 = vunpack.c.l.b16 %v123
    %v275 = vunpack.c.l.b16 %v124
    %v276 = vunpack.c.l.b16 %v125
    %v277 = vunpack.c.l.b16 %v126
    %v278 = vunpack.c.l.b16 %v127
    %v279 = vunpack.c.l.b16 %v128
    %v280 = vunpack.c.l.b16 %v129
    %v281 = vunpack.c.l.b16 %v130
    %v282 = vunpack.c.l.b16 %v131
    %v283 = vunpack.c.l.b16 %v132
    %v284 = vunpack.c.l.b16 %v133
    %v285 = vpack.c.b16 %v222, %v221
    %v286 = vpack.c.b16 %v224, %v223
    %v287 = vpack.c.b16 %v226, %v225
    %v288 = vpack.c.b16 %v228, %v227
    %v289 = vpack.c.b16 %v230, %v229
    %v290 = vpack.c.b16 %v232, %v231
    %v291 = vpack.c.b16 %v234, %v233
    %v292 = vpack.c.b16 %v236, %v235
    %v293 = vpack.c.b16 %v238, %v237
    %v294 = vpack.c.b16 %v240, %v239
    %v295 = vpack.c.b16 %v242, %v241
    %v296 = vpack.c.b16 %v244, %v243
    %v297 = vpack.c.b16 %v246, %v245
    %v298 = vpack.c.b16 %v248, %v247
    %v299 = vpack.c.b16 %v250, %v249
    %v300 = vpack.c.b16 %v252, %v251
    %v301 = vpack.c.b16 %v254, %v253
    %v302 = vpack.c.b16 %v256, %v255
    %v303 = vpack.c.b16 %v258, %v257
    %v304 = vpack.c.b16 %v260, %v259
    %v305 = vpack.c.b16 %v262, %v261
    %v306 = vpack.c.b16 %v264, %v263
    %v307 = vpack.c.b16 %v266, %v265
    %v308 = vpack.c.b16 %v268, %v267
    %v309 = vpack.c.b16 %v270, %v269
    %v310 = vpack.c.b16 %v272, %v271
    %v311 = vpack.c.b16 %v274, %v273
    %v312 = vpack.c.b16 %v276, %v275
    %v313 = vpack.c.b16 %v278, %v277
    %v314 = vpack.c.b16 %v280, %v279
    %v315 = vpack.c.b16 %v282, %v281
    %v316 = vpack.c.b16 %v284, %v283
    %v365 = vunpack.c.l.b16 %v134
    %v366 = vunpack.c.l.b16 %v135
    %v367 = vunpack.c.l.b16 %v136
    %v368 = vunpack.c.l.b16 %v137
    %v369 = vunpack.c.l.b16 %v138
    %v370 = vunpack.c.l.b16 %v139
    %v371 = vunpack.c.l.b16 %v140
    %v372 = vunpack.c.l.b16 %v141
    %v373 = vunpack.c.l.b16 %v142
    %v374 = vunpack.c.l.b16 %v143
    %v375 = vunpack.c.l.b16 %v144
    %v376 = vunpack.c.l.b16 %v145
    %v377 = vunpack.c.l.b16 %v146
    %v378 = vunpack.c.l.b16 %v147
    %v379 = vunpack.c.l.b16 %v148
    %v380 = vunpack.c.l.b16 %v149
    %v381 = vpack.c.b16 %v366, %v365
    %v382 = vpack.c.b16 %v368, %v367
    %v383 = vpack.c.b16 %v370, %v369
    %v384 = vpack.c.b16 %v372, %v371
    %v385 = vpack.c.b16 %v374, %v373
    %v386 = vpack.c.b16 %v376, %v375
    %v387 = vpack.c.b16 %v378, %v377
    %v388 = vpack.c.b16 %v380, %v379
    %397 = vmatprep.subr.bf16.mxu0 0
    %398 = vmatpush1.bf16.msra.mxu0 %v381
    %399 = vmatprep.subr.bf16.mxu0 0
    %400 = vmatpush1.bf16.msra.mxu0 %v382
    %401 = vmatprep.subr.bf16.mxu0 0
    %402 = vmatpush1.bf16.msra.mxu0 %v383
    %403 = vmatprep.subr.bf16.mxu0 0
    %404 = vmatpush1.bf16.msra.mxu0 %v384
    %405 = vmatprep.subr.bf16.mxu0 0
    %406 = vmatpush1.bf16.msra.mxu0 %v385
    %407 = vmatprep.subr.bf16.mxu0 0
    %408 = vmatpush1.bf16.msra.mxu0 %v386
    %409 = vmatprep.subr.bf16.mxu0 0
    %410 = vmatpush1.bf16.msra.mxu0 %v387
    %411 = vmatprep.subr.bf16.mxu0 0
    %412 = vmatpush1.bf16.msra.mxu0 %v388
    %413 = vmatprep.subr.bf16.mxu0 0
    %414 = vmatpush1.bf16.msra.mxu0 0
    %415 = vmatprep.subr.bf16.mxu0 0
    %416 = vmatpush1.bf16.msra.mxu0 0
    %417 = vmatprep.subr.bf16.mxu0 0
    %418 = vmatpush1.bf16.msra.mxu0 0
    %419 = vmatprep.subr.bf16.mxu0 0
    %420 = vmatpush1.bf16.msra.mxu0 0
    %421 = vmatprep.subr.bf16.mxu0 0
    %422 = vmatpush1.bf16.msra.mxu0 0
    %423 = vmatprep.subr.bf16.mxu0 0
    %424 = vmatpush1.bf16.msra.mxu0 0
    %425 = vmatprep.subr.bf16.mxu0 0
    %426 = vmatpush1.bf16.msra.mxu0 0
    %427 = vmatprep.subr.bf16.mxu0 0
    %428 = vmatpush1.bf16.msra.mxu0 0
    %429 = vmatprep.mubr.bf16.mxu0 0
    %430 = vmatmul.mubr.bf16.gmra.mrb[0].mxu0 %v285
    %v431 = vpop.f32.mrb[0].mxu0
    %v432 = vadd.f32 %v155, %v431
    %v433 = vpop.f32.mrb[0].mxu0
    %v434 = vpop.f32.mrb[0].mxu0
    %v435 = vadd.f32 %v155, %v434
    %v436 = vpop.f32.mrb[0].mxu0
    %437 = vmatprep.mubr.bf16.mxu0 0
    %438 = vmatmul.mubr.bf16.gmra.mrb[0].mxu0 %v286
    %v439 = vpop.f32.mrb[0].mxu0
    %v440 = vadd.f32 %v155, %v439
    %v441 = vpop.f32.mrb[0].mxu0
    %v442 = vpop.f32.mrb[0].mxu0
    %v443 = vadd.f32 %v155, %v442
    %v444 = vpop.f32.mrb[0].mxu0
    %445 = vmatprep.mubr.bf16.mxu0 0
    %446 = vmatmul.mubr.bf16.gmra.mrb[0].mxu0 %v287
    %v447 = vpop.f32.mrb[0].mxu0
    %v448 = vadd.f32 %v155, %v447
    %v449 = vpop.f32.mrb[0].mxu0
    %v450 = vpop.f32.mrb[0].mxu0
    %v451 = vadd.f32 %v155, %v450
    %v452 = vpop.f32.mrb[0].mxu0
    %453 = vmatprep.mubr.bf16.mxu0 0
    %454 = vmatmul.mubr.bf16.gmra.mrb[0].mxu0 %v288
    %v455 = vpop.f32.mrb[0].mxu0
    %v456 = vadd.f32 %v155, %v455
    %v457 = vpop.f32.mrb[0].mxu0
    %v458 = vpop.f32.mrb[0].mxu0
    %v459 = vadd.f32 %v155, %v458
    %v460 = vpop.f32.mrb[0].mxu0
    %461 = vmatprep.mubr.bf16.mxu0 0
    %462 = vmatmul.mubr.bf16.gmra.mrb[0].mxu0 %v289
    %v463 = vpop.f32.mrb[0].mxu0
    %v464 = vadd.f32 %v155, %v463
    %v465 = vpop.f32.mrb[0].mxu0
    %v466 = vpop.f32.mrb[0].mxu0
    %v467 = vadd.f32 %v155, %v466
    %v468 = vpop.f32.mrb[0].mxu0
    %469 = vmatprep.mubr.bf16.mxu0 0
    %470 = vmatmul.mubr.bf16.gmra.mrb[0].mxu0 %v290
    %v471 = vpop.f32.mrb[0].mxu0
    %v472 = vadd.f32 %v155, %v471
    %v473 = vpop.f32.mrb[0].mxu0
    %v474 = vpop.f32.mrb[0].mxu0
    %v475 = vadd.f32 %v155, %v474
    %v476 = vpop.f32.mrb[0].mxu0
    %477 = vmatprep.mubr.bf16.mxu0 0
    %478 = vmatmul.mubr.bf16.gmra.mrb[0].mxu0 %v291
    %v479 = vpop.f32.mrb[0].mxu0
    %v480 = vadd.f32 %v155, %v479
    %v481 = vpop.f32.mrb[0].mxu0
    %v482 = vpop.f32.mrb[0].mxu0
    %v483 = vadd.f32 %v155, %v482
    %v484 = vpop.f32.mrb[0].mxu0
    %485 = vmatprep.mubr.bf16.mxu0 0
    %486 = vmatmul.mubr.bf16.gmra.mrb[0].mxu0 %v292
    %v487 = vpop.f32.mrb[0].mxu0
    %v488 = vadd.f32 %v155, %v487
    %v489 = vpop.f32.mrb[0].mxu0
    %v490 = vpop.f32.mrb[0].mxu0
    %v491 = vadd.f32 %v155, %v490
    %v492 = vpop.f32.mrb[0].mxu0
    %493 = vmatprep.mubr.bf16.mxu0 0
    %494 = vmatmul.mubr.bf16.gmra.mrb[0].mxu0 %v293
    %v495 = vpop.f32.mrb[0].mxu0
    %v496 = vadd.f32 %v155, %v495
    %v497 = vpop.f32.mrb[0].mxu0
    %v498 = vpop.f32.mrb[0].mxu0
    %v499 = vadd.f32 %v155, %v498
    %v500 = vpop.f32.mrb[0].mxu0
    %501 = vmatprep.mubr.bf16.mxu0 0
    %502 = vmatmul.mubr.bf16.gmra.mrb[0].mxu0 %v294
    %v503 = vpop.f32.mrb[0].mxu0
    %v504 = vadd.f32 %v155, %v503
    %v505 = vpop.f32.mrb[0].mxu0
    %v506 = vpop.f32.mrb[0].mxu0
    %v507 = vadd.f32 %v155, %v506
    %v508 = vpop.f32.mrb[0].mxu0
    %509 = vmatprep.mubr.bf16.mxu0 0
    %510 = vmatmul.mubr.bf16.gmra.mrb[0].mxu0 %v295
    %v511 = vpop.f32.mrb[0].mxu0
    %v512 = vadd.f32 %v155, %v511
    %v513 = vpop.f32.mrb[0].mxu0
    %v514 = vpop.f32.mrb[0].mxu0
    %v515 = vadd.f32 %v155, %v514
    %v516 = vpop.f32.mrb[0].mxu0
    %517 = vmatprep.mubr.bf16.mxu0 0
    %518 = vmatmul.mubr.bf16.gmra.mrb[0].mxu0 %v296
    %v519 = vpop.f32.mrb[0].mxu0
    %v520 = vadd.f32 %v155, %v519
    %v521 = vpop.f32.mrb[0].mxu0
    %v522 = vpop.f32.mrb[0].mxu0
    %v523 = vadd.f32 %v155, %v522
    %v524 = vpop.f32.mrb[0].mxu0
    %525 = vmatprep.mubr.bf16.mxu0 0
    %526 = vmatmul.mubr.bf16.gmra.mrb[0].mxu0 %v297
    %v527 = vpop.f32.mrb[0].mxu0
    %v528 = vadd.f32 %v155, %v527
    %v529 = vpop.f32.mrb[0].mxu0
    %v530 = vpop.f32.mrb[0].mxu0
    %v531 = vadd.f32 %v155, %v530
    %v532 = vpop.f32.mrb[0].mxu0
    %533 = vmatprep.mubr.bf16.mxu0 0
    %534 = vmatmul.mubr.bf16.gmra.mrb[0].mxu0 %v298
    %v535 = vpop.f32.mrb[0].mxu0
    %v536 = vadd.f32 %v155, %v535
    %v537 = vpop.f32.mrb[0].mxu0
    %v538 = vpop.f32.mrb[0].mxu0
    %v539 = vadd.f32 %v155, %v538
    %v540 = vpop.f32.mrb[0].mxu0
    %541 = vmatprep.mubr.bf16.mxu0 0
    %542 = vmatmul.mubr.bf16.gmra.mrb[0].mxu0 %v299
    %v543 = vpop.f32.mrb[0].mxu0
    %v544 = vadd.f32 %v155, %v543
    %v545 = vpop.f32.mrb[0].mxu0
    %v546 = vpop.f32.mrb[0].mxu0
    %v547 = vadd.f32 %v155, %v546
    %v548 = vpop.f32.mrb[0].mxu0
    %549 = vmatprep.mubr.bf16.mxu0 0
    %550 = vmatmul.mubr.bf16.gmra.mrb[0].mxu0 %v300
    %v551 = vpop.f32.mrb[0].mxu0
    %v552 = vadd.f32 %v155, %v551
    %v553 = vpop.f32.mrb[0].mxu0
    %v554 = vpop.f32.mrb[0].mxu0
    %v555 = vadd.f32 %v155, %v554
    %v556 = vpop.f32.mrb[0].mxu0
    %557 = vmatprep.mubr.bf16.mxu0 0
    %558 = vmatmul.mubr.bf16.gmra.mrb[0].mxu0 %v301
    %v559 = vpop.f32.mrb[0].mxu0
    %v560 = vadd.f32 %v155, %v559
    %v561 = vpop.f32.mrb[0].mxu0
    %v562 = vpop.f32.mrb[0].mxu0
    %v563 = vadd.f32 %v155, %v562
    %v564 = vpop.f32.mrb[0].mxu0
    %565 = vmatprep.mubr.bf16.mxu0 0
    %566 = vmatmul.mubr.bf16.gmra.mrb[0].mxu0 %v302
    %v567 = vpop.f32.mrb[0].mxu0
    %v568 = vadd.f32 %v155, %v567
    %v569 = vpop.f32.mrb[0].mxu0
    %v570 = vpop.f32.mrb[0].mxu0
    %v571 = vadd.f32 %v155, %v570
    %v572 = vpop.f32.mrb[0].mxu0
    %573 = vmatprep.mubr.bf16.mxu0 0
    %574 = vmatmul.mubr.bf16.gmra.mrb[0].mxu0 %v303
    %v575 = vpop.f32.mrb[0].mxu0
    %v576 = vadd.f32 %v155, %v575
    %v577 = vpop.f32.mrb[0].mxu0
    %v578 = vpop.f32.mrb[0].mxu0
    %v579 = vadd.f32 %v155, %v578
    %v580 = vpop.f32.mrb[0].mxu0
    %581 = vmatprep.mubr.bf16.mxu0 0
    %582 = vmatmul.mubr.bf16.gmra.mrb[0].mxu0 %v304
    %v583 = vpop.f32.mrb[0].mxu0
    %v584 = vadd.f32 %v155, %v583
    %v585 = vpop.f32.mrb[0].mxu0
    %v586 = vpop.f32.mrb[0].mxu0
    %v587 = vadd.f32 %v155, %v586
    %v588 = vpop.f32.mrb[0].mxu0
    %589 = vmatprep.mubr.bf16.mxu0 0
    %590 = vmatmul.mubr.bf16.gmra.mrb[0].mxu0 %v305
    %v591 = vpop.f32.mrb[0].mxu0
    %v592 = vadd.f32 %v155, %v591
    %v593 = vpop.f32.mrb[0].mxu0
    %v594 = vpop.f32.mrb[0].mxu0
    %v595 = vadd.f32 %v155, %v594
    %v596 = vpop.f32.mrb[0].mxu0
    %597 = vmatprep.mubr.bf16.mxu0 0
    %598 = vmatmul.mubr.bf16.gmra.mrb[0].mxu0 %v306
    %v599 = vpop.f32.mrb[0].mxu0
    %v600 = vadd.f32 %v155, %v599
    %v601 = vpop.f32.mrb[0].mxu0
    %v602 = vpop.f32.mrb[0].mxu0
    %v603 = vadd.f32 %v155, %v602
    %v604 = vpop.f32.mrb[0].mxu0
    %605 = vmatprep.mubr.bf16.mxu0 0
    %606 = vmatmul.mubr.bf16.gmra.mrb[0].mxu0 %v307
    %v607 = vpop.f32.mrb[0].mxu0
    %v608 = vadd.f32 %v155, %v607
    %v609 = vpop.f32.mrb[0].mxu0
    %v610 = vpop.f32.mrb[0].mxu0
    %v611 = vadd.f32 %v155, %v610
    %v612 = vpop.f32.mrb[0].mxu0
    %613 = vmatprep.mubr.bf16.mxu0 0
    %614 = vmatmul.mubr.bf16.gmra.mrb[0].mxu0 %v308
    %v615 = vpop.f32.mrb[0].mxu0
    %v616 = vadd.f32 %v155, %v615
    %v617 = vpop.f32.mrb[0].mxu0
    %v618 = vpop.f32.mrb[0].mxu0
    %v619 = vadd.f32 %v155, %v618
    %v620 = vpop.f32.mrb[0].mxu0
    %621 = vmatprep.mubr.bf16.mxu0 0
    %622 = vmatmul.mubr.bf16.gmra.mrb[0].mxu0 %v309
    %v623 = vpop.f32.mrb[0].mxu0
    %v624 = vadd.f32 %v155, %v623
    %v625 = vpop.f32.mrb[0].mxu0
    %v626 = vpop.f32.mrb[0].mxu0
    %v627 = vadd.f32 %v155, %v626
    %v628 = vpop.f32.mrb[0].mxu0
    %629 = vmatprep.mubr.bf16.mxu0 0
    %630 = vmatmul.mubr.bf16.gmra.mrb[0].mxu0 %v310
    %v631 = vpop.f32.mrb[0].mxu0
    %v632 = vadd.f32 %v155, %v631
    %v633 = vpop.f32.mrb[0].mxu0
    %v634 = vpop.f32.mrb[0].mxu0
    %v635 = vadd.f32 %v155, %v634
    %v636 = vpop.f32.mrb[0].mxu0
    %637 = vmatprep.mubr.bf16.mxu0 0
    %638 = vmatmul.mubr.bf16.gmra.mrb[0].mxu0 %v311
    %v639 = vpop.f32.mrb[0].mxu0
    %v640 = vadd.f32 %v155, %v639
    %v641 = vpop.f32.mrb[0].mxu0
    %v642 = vpop.f32.mrb[0].mxu0
    %v643 = vadd.f32 %v155, %v642
    %v644 = vpop.f32.mrb[0].mxu0
    %645 = vmatprep.mubr.bf16.mxu0 0
    %646 = vmatmul.mubr.bf16.gmra.mrb[0].mxu0 %v312
    %v647 = vpop.f32.mrb[0].mxu0
    %v648 = vadd.f32 %v155, %v647
    %v649 = vpop.f32.mrb[0].mxu0
    %v650 = vpop.f32.mrb[0].mxu0
    %v651 = vadd.f32 %v155, %v650
    %v652 = vpop.f32.mrb[0].mxu0
    %653 = vmatprep.mubr.bf16.mxu0 0
    %654 = vmatmul.mubr.bf16.gmra.mrb[0].mxu0 %v313
    %v655 = vpop.f32.mrb[0].mxu0
    %v656 = vadd.f32 %v155, %v655
    %v657 = vpop.f32.mrb[0].mxu0
    %v658 = vpop.f32.mrb[0].mxu0
    %v659 = vadd.f32 %v155, %v658
    %v660 = vpop.f32.mrb[0].mxu0
    %661 = vmatprep.mubr.bf16.mxu0 0
    %662 = vmatmul.mubr.bf16.gmra.mrb[0].mxu0 %v314
    %v663 = vpop.f32.mrb[0].mxu0
    %v664 = vadd.f32 %v155, %v663
    %v665 = vpop.f32.mrb[0].mxu0
    %v666 = vpop.f32.mrb[0].mxu0
    %v667 = vadd.f32 %v155, %v666
    %v668 = vpop.f32.mrb[0].mxu0
    %669 = vmatprep.mubr.bf16.mxu0 0
    %670 = vmatmul.mubr.bf16.gmra.mrb[0].mxu0 %v315
    %v671 = vpop.f32.mrb[0].mxu0
    %v672 = vadd.f32 %v155, %v671
    %v673 = vpop.f32.mrb[0].mxu0
    %v674 = vpop.f32.mrb[0].mxu0
    %v675 = vadd.f32 %v155, %v674
    %v676 = vpop.f32.mrb[0].mxu0
    %677 = vmatprep.mubr.bf16.mxu0 0
    %678 = vmatmul.mubr.bf16.gmra.mrb[0].mxu0 %v316
    %v679 = vpop.f32.mrb[0].mxu0
    %v680 = vadd.f32 %v155, %v679
    %v681 = vpop.f32.mrb[0].mxu0
    %v682 = vpop.f32.mrb[0].mxu0
    %v683 = vadd.f32 %v155, %v682
    %v684 = vpop.f32.mrb[0].mxu0
    %685 = vdwg.mxu0
    %v686 = vld [vmem:[#allocation8] sm:$0x1]
    %vm687 = vcmp.ge.f32.partialorder %v432, 0.0
    %vm688 = vcmp.ge.f32.partialorder %v435, 0.0
    %vm689 = vcmp.ge.f32.partialorder %v440, 0.0
    %vm690 = vcmp.ge.f32.partialorder %v443, 0.0
    %vm691 = vcmp.ge.f32.partialorder %v448, 0.0
    %vm692 = vcmp.ge.f32.partialorder %v451, 0.0
    %vm693 = vcmp.ge.f32.partialorder %v456, 0.0
    %vm694 = vcmp.ge.f32.partialorder %v459, 0.0
    %vm695 = vcmp.ge.f32.partialorder %v464, 0.0
    %vm696 = vcmp.ge.f32.partialorder %v467, 0.0
    %vm697 = vcmp.ge.f32.partialorder %v472, 0.0
    %vm698 = vcmp.ge.f32.partialorder %v475, 0.0
    %vm699 = vcmp.ge.f32.partialorder %v480, 0.0
    %vm700 = vcmp.ge.f32.partialorder %v483, 0.0
    %vm701 = vcmp.ge.f32.partialorder %v488, 0.0
    %vm702 = vcmp.ge.f32.partialorder %v491, 0.0
    %vm703 = vcmp.ge.f32.partialorder %v496, 0.0
    %vm704 = vcmp.ge.f32.partialorder %v499, 0.0
    %vm705 = vcmp.ge.f32.partialorder %v504, 0.0
    %vm706 = vcmp.ge.f32.partialorder %v507, 0.0
    %vm707 = vcmp.ge.f32.partialorder %v512, 0.0
    %vm708 = vcmp.ge.f32.partialorder %v515, 0.0
    %vm709 = vcmp.ge.f32.partialorder %v520, 0.0
    %vm710 = vcmp.ge.f32.partialorder %v523, 0.0
    %vm711 = vcmp.ge.f32.partialorder %v528, 0.0
    %vm712 = vcmp.ge.f32.partialorder %v531, 0.0
    %vm713 = vcmp.ge.f32.partialorder %v536, 0.0
    %vm714 = vcmp.ge.f32.partialorder %v539, 0.0
    %vm715 = vcmp.ge.f32.partialorder %v544, 0.0
    %vm716 = vcmp.ge.f32.partialorder %v547, 0.0
    %vm717 = vcmp.ge.f32.partialorder %v552, 0.0
    %vm718 = vcmp.ge.f32.partialorder %v555, 0.0
    %vm719 = vcmp.ge.f32.partialorder %v560, 0.0
    %vm720 = vcmp.ge.f32.partialorder %v563, 0.0
    %vm721 = vcmp.ge.f32.partialorder %v568, 0.0
    %vm722 = vcmp.ge.f32.partialorder %v571, 0.0
    %vm723 = vcmp.ge.f32.partialorder %v576, 0.0
    %vm724 = vcmp.ge.f32.partialorder %v579, 0.0
    %vm725 = vcmp.ge.f32.partialorder %v584, 0.0
    %vm726 = vcmp.ge.f32.partialorder %v587, 0.0
    %vm727 = vcmp.ge.f32.partialorder %v592, 0.0
    %vm728 = vcmp.ge.f32.partialorder %v595, 0.0
    %vm729 = vcmp.ge.f32.partialorder %v600, 0.0
    %vm730 = vcmp.ge.f32.partialorder %v603, 0.0
    %vm731 = vcmp.ge.f32.partialorder %v608, 0.0
    %vm732 = vcmp.ge.f32.partialorder %v611, 0.0
    %vm733 = vcmp.ge.f32.partialorder %v616, 0.0
    %vm734 = vcmp.ge.f32.partialorder %v619, 0.0
    %vm735 = vcmp.ge.f32.partialorder %v624, 0.0
    %vm736 = vcmp.ge.f32.partialorder %v627, 0.0
    %vm737 = vcmp.ge.f32.partialorder %v632, 0.0
    %vm738 = vcmp.ge.f32.partialorder %v635, 0.0
    %vm739 = vcmp.ge.f32.partialorder %v640, 0.0
    %vm740 = vcmp.ge.f32.partialorder %v643, 0.0
    %vm741 = vcmp.ge.f32.partialorder %v648, 0.0
    %vm742 = vcmp.ge.f32.partialorder %v651, 0.0
    %vm743 = vcmp.ge.f32.partialorder %v656, 0.0
    %vm744 = vcmp.ge.f32.partialorder %v659, 0.0
    %vm745 = vcmp.ge.f32.partialorder %v664, 0.0
    %vm746 = vcmp.ge.f32.partialorder %v667, 0.0
    %vm747 = vcmp.ge.f32.partialorder %v672, 0.0
    %vm748 = vcmp.ge.f32.partialorder %v675, 0.0
    %vm749 = vcmp.ge.f32.partialorder %v680, 0.0
    %vm750 = vcmp.ge.f32.partialorder %v683, 0.0
    %v752 = vlaneseq
    %v753 = vshrl.u32 %v752, 7
    %v754 = vsub.s32 0, %v753
    %v755 = vrot.slane %v686, %v754
    %v757 = vmul.f32 %v755, %v432
    %v758 = vmul.f32 %v755, %v435
    %v759 = vmul.f32 %v755, %v440
    %v760 = vmul.f32 %v755, %v443
    %v761 = vmul.f32 %v755, %v448
    %v762 = vmul.f32 %v755, %v451
    %v763 = vmul.f32 %v755, %v456
    %v764 = vmul.f32 %v755, %v459
    %v765 = vmul.f32 %v755, %v464
    %v766 = vmul.f32 %v755, %v467
    %v767 = vmul.f32 %v755, %v472
    %v768 = vmul.f32 %v755, %v475
    %v769 = vmul.f32 %v755, %v480
    %v770 = vmul.f32 %v755, %v483
    %v771 = vmul.f32 %v755, %v488
    %v772 = vmul.f32 %v755, %v491
    %v773 = vmul.f32 %v755, %v496
    %v774 = vmul.f32 %v755, %v499
    %v775 = vmul.f32 %v755, %v504
    %v776 = vmul.f32 %v755, %v507
    %v777 = vmul.f32 %v755, %v512
    %v778 = vmul.f32 %v755, %v515
    %v779 = vmul.f32 %v755, %v520
    %v780 = vmul.f32 %v755, %v523
    %v781 = vmul.f32 %v755, %v528
    %v782 = vmul.f32 %v755, %v531
    %v783 = vmul.f32 %v755, %v536
    %v784 = vmul.f32 %v755, %v539
    %v785 = vmul.f32 %v755, %v544
    %v786 = vmul.f32 %v755, %v547
    %v787 = vmul.f32 %v755, %v552
    %v788 = vmul.f32 %v755, %v555
    %v789 = vmul.f32 %v755, %v560
    %v790 = vmul.f32 %v755, %v563
    %v791 = vmul.f32 %v755, %v568
    %v792 = vmul.f32 %v755, %v571
    %v793 = vmul.f32 %v755, %v576
    %v794 = vmul.f32 %v755, %v579
    %v795 = vmul.f32 %v755, %v584
    %v796 = vmul.f32 %v755, %v587
    %v797 = vmul.f32 %v755, %v592
    %v798 = vmul.f32 %v755, %v595
    %v799 = vmul.f32 %v755, %v600
    %v800 = vmul.f32 %v755, %v603
    %v801 = vmul.f32 %v755, %v608
    %v802 = vmul.f32 %v755, %v611
    %v803 = vmul.f32 %v755, %v616
    %v804 = vmul.f32 %v755, %v619
    %v805 = vmul.f32 %v755, %v624
    %v806 = vmul.f32 %v755, %v627
    %v807 = vmul.f32 %v755, %v632
    %v808 = vmul.f32 %v755, %v635
    %v809 = vmul.f32 %v755, %v640
    %v810 = vmul.f32 %v755, %v643
    %v811 = vmul.f32 %v755, %v648
    %v812 = vmul.f32 %v755, %v651
    %v813 = vmul.f32 %v755, %v656
    %v814 = vmul.f32 %v755, %v659
    %v815 = vmul.f32 %v755, %v664
    %v816 = vmul.f32 %v755, %v667
    %v817 = vmul.f32 %v755, %v672
    %v818 = vmul.f32 %v755, %v675
    %v819 = vmul.f32 %v755, %v680
    %v820 = vmul.f32 %v755, %v683
    %v821 = vsel %vm687, %v432, %v757
    %v822 = vsel %vm688, %v435, %v758
    %v823 = vsel %vm689, %v440, %v759
    %v824 = vsel %vm690, %v443, %v760
    %v825 = vsel %vm691, %v448, %v761
    %v826 = vsel %vm692, %v451, %v762
    %v827 = vsel %vm693, %v456, %v763
    %v828 = vsel %vm694, %v459, %v764
    %v829 = vsel %vm695, %v464, %v765
    %v830 = vsel %vm696, %v467, %v766
    %v831 = vsel %vm697, %v472, %v767
    %v832 = vsel %vm698, %v475, %v768
    %v833 = vsel %vm699, %v480, %v769
    %v834 = vsel %vm700, %v483, %v770
    %v835 = vsel %vm701, %v488, %v771
    %v836 = vsel %vm702, %v491, %v772
    %v837 = vsel %vm703, %v496, %v773
    %v838 = vsel %vm704, %v499, %v774
    %v839 = vsel %vm705, %v504, %v775
    %v840 = vsel %vm706, %v507, %v776
    %v841 = vsel %vm707, %v512, %v777
    %v842 = vsel %vm708, %v515, %v778
    %v843 = vsel %vm709, %v520, %v779
    %v844 = vsel %vm710, %v523, %v780
    %v845 = vsel %vm711, %v528, %v781
    %v846 = vsel %vm712, %v531, %v782
    %v847 = vsel %vm713, %v536, %v783
    %v848 = vsel %vm714, %v539, %v784
    %v849 = vsel %vm715, %v544, %v785
    %v850 = vsel %vm716, %v547, %v786
    %v851 = vsel %vm717, %v552, %v787
    %v852 = vsel %vm718, %v555, %v788
    %v853 = vsel %vm719, %v560, %v789
    %v854 = vsel %vm720, %v563, %v790
    %v855 = vsel %vm721, %v568, %v791
    %v856 = vsel %vm722, %v571, %v792
    %v857 = vsel %vm723, %v576, %v793
    %v858 = vsel %vm724, %v579, %v794
    %v859 = vsel %vm725, %v584, %v795
    %v860 = vsel %vm726, %v587, %v796
    %v861 = vsel %vm727, %v592, %v797
    %v862 = vsel %vm728, %v595, %v798
    %v863 = vsel %vm729, %v600, %v799
    %v864 = vsel %vm730, %v603, %v800
    %v865 = vsel %vm731, %v608, %v801
    %v866 = vsel %vm732, %v611, %v802
    %v867 = vsel %vm733, %v616, %v803
    %v868 = vsel %vm734, %v619, %v804
    %v869 = vsel %vm735, %v624, %v805
    %v870 = vsel %vm736, %v627, %v806
    %v871 = vsel %vm737, %v632, %v807
    %v872 = vsel %vm738, %v635, %v808
    %v873 = vsel %vm739, %v640, %v809
    %v874 = vsel %vm740, %v643, %v810
    %v875 = vsel %vm741, %v648, %v811
    %v876 = vsel %vm742, %v651, %v812
    %v877 = vsel %vm743, %v656, %v813
    %v878 = vsel %vm744, %v659, %v814
    %v879 = vsel %vm745, %v664, %v815
    %v880 = vsel %vm746, %v667, %v816
    %v881 = vsel %vm747, %v672, %v817
    %v882 = vsel %vm748, %v675, %v818
    %v883 = vsel %vm749, %v680, %v819
    %v884 = vsel %vm750, %v683, %v820
    %885 = vst [vmem:[#allocation10] sm:$0xff] %v821
    %886 = vst [vmem:[#allocation10 + $0x8] sm:$0xff] %v822
    %887 = vst [vmem:[#allocation10 + $0x10] sm:$0xff] %v823
    %888 = vst [vmem:[#allocation10 + $0x18] sm:$0xff] %v824
    %889 = vst [vmem:[#allocation10 + $0x20] sm:$0xff] %v825
    %890 = vst [vmem:[#allocation10 + $0x28] sm:$0xff] %v826
    %891 = vst [vmem:[#allocation10 + $0x30] sm:$0xff] %v827
    %892 = vst [vmem:[#allocation10 + $0x38] sm:$0xff] %v828
    %893 = vst [vmem:[#allocation10 + $0x40] sm:$0xff] %v829
    %894 = vst [vmem:[#allocation10 + $0x48] sm:$0xff] %v830
    %895 = vst [vmem:[#allocation10 + $0x50] sm:$0xff] %v831
    %896 = vst [vmem:[#allocation10 + $0x58] sm:$0xff] %v832
    %897 = vst [vmem:[#allocation10 + $0x60] sm:$0xff] %v833
    %898 = vst [vmem:[#allocation10 + $0x68] sm:$0xff] %v834
    %899 = vst [vmem:[#allocation10 + $0x70] sm:$0xff] %v835
    %900 = vst [vmem:[#allocation10 + $0x78] sm:$0xff] %v836
    %901 = vst [vmem:[#allocation10 + $0x80] sm:$0xff] %v837
    %902 = vst [vmem:[#allocation10 + $0x88] sm:$0xff] %v838
    %903 = vst [vmem:[#allocation10 + $0x90] sm:$0xff] %v839
    %904 = vst [vmem:[#allocation10 + $0x98] sm:$0xff] %v840
    %905 = vst [vmem:[#allocation10 + $0xa0] sm:$0xff] %v841
    %906 = vst [vmem:[#allocation10 + $0xa8] sm:$0xff] %v842
    %907 = vst [vmem:[#allocation10 + $0xb0] sm:$0xff] %v843
    %908 = vst [vmem:[#allocation10 + $0xb8] sm:$0xff] %v844
    %909 = vst [vmem:[#allocation10 + $0xc0] sm:$0xff] %v845
    %910 = vst [vmem:[#allocation10 + $0xc8] sm:$0xff] %v846
    %911 = vst [vmem:[#allocation10 + $0xd0] sm:$0xff] %v847
    %912 = vst [vmem:[#allocation10 + $0xd8] sm:$0xff] %v848
    %913 = vst [vmem:[#allocation10 + $0xe0] sm:$0xff] %v849
    %914 = vst [vmem:[#allocation10 + $0xe8] sm:$0xff] %v850
    %915 = vst [vmem:[#allocation10 + $0xf0] sm:$0xff] %v851
    %916 = vst [vmem:[#allocation10 + $0xf8] sm:$0xff] %v852
    %917 = vst [vmem:[#allocation10 + $0x100] sm:$0xff] %v853
    %918 = vst [vmem:[#allocation10 + $0x108] sm:$0xff] %v854
    %919 = vst [vmem:[#allocation10 + $0x110] sm:$0xff] %v855
    %920 = vst [vmem:[#allocation10 + $0x118] sm:$0xff] %v856
    %921 = vst [vmem:[#allocation10 + $0x120] sm:$0xff] %v857
    %922 = vst [vmem:[#allocation10 + $0x128] sm:$0xff] %v858
    %923 = vst [vmem:[#allocation10 + $0x130] sm:$0xff] %v859
    %924 = vst [vmem:[#allocation10 + $0x138] sm:$0xff] %v860
    %925 = vst [vmem:[#allocation10 + $0x140] sm:$0xff] %v861
    %926 = vst [vmem:[#allocation10 + $0x148] sm:$0xff] %v862
    %927 = vst [vmem:[#allocation10 + $0x150] sm:$0xff] %v863
    %928 = vst [vmem:[#allocation10 + $0x158] sm:$0xff] %v864
    %929 = vst [vmem:[#allocation10 + $0x160] sm:$0xff] %v865
    %930 = vst [vmem:[#allocation10 + $0x168] sm:$0xff] %v866
    %931 = vst [vmem:[#allocation10 + $0x170] sm:$0xff] %v867
    %932 = vst [vmem:[#allocation10 + $0x178] sm:$0xff] %v868
    %933 = vst [vmem:[#allocation10 + $0x180] sm:$0xff] %v869
    %934 = vst [vmem:[#allocation10 + $0x188] sm:$0xff] %v870
    %935 = vst [vmem:[#allocation10 + $0x190] sm:$0xff] %v871
    %936 = vst [vmem:[#allocation10 + $0x198] sm:$0xff] %v872
    %937 = vst [vmem:[#allocation10 + $0x1a0] sm:$0xff] %v873
    %938 = vst [vmem:[#allocation10 + $0x1a8] sm:$0xff] %v874
    %939 = vst [vmem:[#allocation10 + $0x1b0] sm:$0xff] %v875
    %940 = vst [vmem:[#allocation10 + $0x1b8] sm:$0xff] %v876
    %941 = vst [vmem:[#allocation10 + $0x1c0] sm:$0xff] %v877
    %942 = vst [vmem:[#allocation10 + $0x1c8] sm:$0xff] %v878
    %943 = vst [vmem:[#allocation10 + $0x1d0] sm:$0xff] %v879
    %944 = vst [vmem:[#allocation10 + $0x1d8] sm:$0xff] %v880
    %945 = vst [vmem:[#allocation10 + $0x1e0] sm:$0xff] %v881
    %946 = vst [vmem:[#allocation10 + $0x1e8] sm:$0xff] %v882
    %947 = vst [vmem:[#allocation10 + $0x1f0] sm:$0xff] %v883
    %948 = vst [vmem:[#allocation10 + $0x1f8] sm:$0xff] %v884
    // Predicated region
    $region34: #{tpu_custom_call.1} parent=1 // pred_check
      _
    $region35: #{tpu_custom_call.1} parent=1 // pred_check_branch
      %950 = sbr.rel (0) target = $region37
    $region36: #{tpu_custom_call.1} parent=1 // pred_region
      %s952 = ssub.s32 8192, 8192
      %953 = vsyncadd [#allocation4], %s952
      %s954 = sshll.u32 [#allocation10], 4
      %s955 = int_to_ptr.vmem [resolvable:$true] %s954
      %960 = dma.vmem_to_hbm [thread:$0]  %s955, 8192, %s4, [#allocation4], 128, 128, 8
    $region37: #{tpu_custom_call.1} parent=1 // pred_fallthru
      _
    // Predicated region
    $region38: #{tpu_custom_call.1} parent=1 // pred_check
      _
    $region39: #{tpu_custom_call.1} parent=1 // pred_check_branch
      %962 = sbr.rel (0) target = $region41
    $region40: #{tpu_custom_call.1} parent=1 // pred_region
      %963 = dma.done [#allocation4], 8192
    $region41: #{tpu_custom_call.1} parent=1 // pred_fallthru
      _
    %964 = vsyncpa [#allocation3], 1
    %965 = vsyncpa [#allocation6], 1
    %966 = vsyncpa [#allocation9], 1
    %967 = vsyncpa [#allocation4], 1

</llo_original>
